<compile_context>
chip_gen: v6e
topology: v6e:2x2x1
jax: 0.10.0
libtpu: 0.0.40
codegen_flags: <defaults>
</compile_context>

<pallas_src>
import jax
import jax.numpy as jnp
from jax import lax
from jax.experimental import pallas as pl
from jax.experimental.pallas import tpu as pltpu


def _round_up(x, m):
    return ((x + m - 1) // m) * m


def _vmem_budget_bytes():
    """Usable VMEM budget (bytes), generation-aware, with headroom."""
    try:
        phys = int(pltpu.get_tpu_info().vmem_capacity_bytes)
    except Exception:
        phys = 64 << 20            # conservative default: v7x (smallest VMEM)
    return (phys * 3) // 4         # leave headroom for compiler scratch


def _select_tiles(h_pad, tb, itemsize, budget):
    """Pick (tn, tk); tk == h_pad means the reduction axis is collapsed."""
    lane = 128
    n_units = h_pad // lane

    def fits(tn, tk, with_acc):
        w_bytes = 2 * tn * tk * itemsize          # weight double buffer
        x_bytes = 2 * tb * h_pad * itemsize       # resident first-token slab
        o_bytes = 2 * tb * tn * itemsize          # output double buffer
        b_bytes = 2 * tn * itemsize               # bias tile (tiny)
        a_bytes = tb * tn * 4 if with_acc else 0  # f32 accumulator scratch
        return w_bytes + x_bytes + o_bytes + b_bytes + a_bytes <= budget

    # Candidate tn: multiples of 128 that divide h_pad, up to 512, largest
    # first; prefer ones giving an even number of N blocks (v7x 2-TC split).
    cands = [lane * d for d in range(min(n_units, 4), 0, -1) if n_units % d == 0]
    even = [t for t in cands if (h_pad // t) % 2 == 0]
    ordered = even + [t for t in cands if t not in even]
    if not ordered:
        ordered = [lane]

    # Preferred: full reduction in one dot (no K axis, no accumulator).
    for tn in ordered:
        if fits(tn, h_pad, with_acc=False):
            return tn, h_pad

    # Fallback: K-tiled reduction (very large H / f32 weights / tight VMEM).
    for tn in ordered:
        for dk in range(min(n_units, 16), 0, -1):   # tk up to 2048
            if n_units % dk:
                continue
            tk = lane * dk
            if fits(tn, tk, with_acc=True):
                return tn, tk

    return lane, lane   # best effort


def _pooler_kernel_fullk(x_ref, w_ref, b_ref, o_ref):
    # x_ref: (tb, H_pad); w_ref: (tn, H_pad) in (out, in) layout; b_ref: (1, tn)
    y = lax.dot_general(
        x_ref[...], w_ref[...],
        dimension_numbers=(((1,), (1,)), ((), ())),
        preferred_element_type=jnp.float32,
    )
    y = y + b_ref[...].astype(jnp.float32)
    o_ref[...] = jnp.tanh(y).astype(o_ref.dtype)


def _pooler_kernel_ktiled(x_ref, w_ref, b_ref, o_ref, acc_ref):
    # x_ref: (tb, H_pad) resident; w_ref: (tn, tk); acc_ref: (tb, tn) f32
    tk = w_ref.shape[1]
    k = pl.program_id(2)

    @pl.when(k == 0)
    def _():
        acc_ref[...] = jnp.zeros_like(acc_ref)

    k0 = pl.multiple_of(k * tk, 128)
    acc_ref[...] += lax.dot_general(
        x_ref[:, pl.ds(k0, tk)], w_ref[...],
        dimension_numbers=(((1,), (1,)), ((), ())),
        preferred_element_type=jnp.float32,
    )

    @pl.when(k == pl.num_programs(2) - 1)
    def _():
        y = acc_ref[...] + b_ref[...].astype(jnp.float32)
        o_ref[...] = jnp.tanh(y).astype(o_ref.dtype)


def pooler_forward(hidden_states, weight, bias):
    """hidden_states: (B, S, H); weight: (H, H) PyTorch (out, in); bias: (H,)."""
    B, S, H = hidden_states.shape
    dtype = hidden_states.dtype
    itemsize = jnp.dtype(dtype).itemsize

    # Only the first token is needed: never DMA the full (B, S, H) tensor.
    x = hidden_states[:, 0, :]                                   # (B, H)

    # Lane-dense padding of the hidden dim, sublane padding of the batch.
    h_pad = _round_up(H, 128)
    sub = 16 if itemsize == 2 else 8
    b_pad = _round_up(max(B, sub), sub)
    tb_max = 256
    if b_pad > tb_max:                      # large serving batch: tile it too
        b_pad = _round_up(b_pad, tb_max)
        tb = tb_max
    else:
        tb = b_pad

    if (b_pad, h_pad) != (B, H):
        x = jnp.pad(x, ((0, b_pad - B), (0, h_pad - H)))
    w = weight
    b_vec = bias
    if h_pad != H:
        w = jnp.pad(w, ((0, h_pad - H), (0, h_pad - H)))
        b_vec = jnp.pad(b_vec, (0, h_pad - H))
    b2d = b_vec.reshape(1, h_pad)

    budget = _vmem_budget_bytes()
    tn, tk = _select_tiles(h_pad, tb, itemsize, budget)

    need = (2 * tn * tk * itemsize + 2 * tb * h_pad * itemsize
            + 2 * tb * tn * itemsize + 2 * tn * itemsize + tb * tn * 4)
    vmem_limit = int(min(budget, max(need + (8 << 20), 32 << 20)))

    cost = pl.CostEstimate(
        flops=2 * b_pad * h_pad * h_pad,
        transcendentals=b_pad * h_pad,
        bytes_accessed=(h_pad * h_pad + 2 * b_pad * h_pad + h_pad) * itemsize,
    )

    if tk == h_pad:
        # Preferred path: no reduction axis, no accumulator, no epilogue branch.
        grid = (b_pad // tb, h_pad // tn)
        out = pl.pallas_call(
            _pooler_kernel_fullk,
            out_shape=jax.ShapeDtypeStruct((b_pad, h_pad), dtype),
            grid_spec=pltpu.PrefetchScalarGridSpec(
                num_scalar_prefetch=0,
                grid=grid,
                in_specs=[
                    pl.BlockSpec((tb, h_pad), lambda b, j: (b, 0)),  # x resident over j
                    pl.BlockSpec((tn, h_pad), lambda b, j: (j, 0)),  # W (out, in)
                    pl.BlockSpec((1, tn), lambda b, j: (0, j)),      # bias
                ],
                out_specs=pl.BlockSpec((tb, tn), lambda b, j: (b, j)),
            ),
            compiler_params=pltpu.CompilerParams(
                dimension_semantics=("parallel", "parallel"),
                vmem_limit_bytes=vmem_limit,
            ),
            cost_estimate=cost,
        )(x, w, b2d)
    else:
        # Fallback: K-tiled reduction; x slab stays resident (constant index).
        grid = (b_pad // tb, h_pad // tn, h_pad // tk)
        out = pl.pallas_call(
            _pooler_kernel_ktiled,
            out_shape=jax.ShapeDtypeStruct((b_pad, h_pad), dtype),
            grid_spec=pltpu.PrefetchScalarGridSpec(
                num_scalar_prefetch=0,
                grid=grid,
                in_specs=[
                    pl.BlockSpec((tb, h_pad), lambda b, j, k: (b, 0)),  # x resident
                    pl.BlockSpec((tn, tk), lambda b, j, k: (j, k)),     # W (out, in)
                    pl.BlockSpec((1, tn), lambda b, j, k: (0, j)),      # bias
                ],
                out_specs=pl.BlockSpec((tb, tn), lambda b, j, k: (b, j)),
                scratch_shapes=[pltpu.VMEM((tb, tn), jnp.float32)],
            ),
            compiler_params=pltpu.CompilerParams(
                dimension_semantics=("parallel", "parallel", "arbitrary"),
                vmem_limit_bytes=vmem_limit,
            ),
            cost_estimate=cost,
        )(x, w, b2d)

    return out[:B, :H]


def pooler_reference(hidden_states, weight, bias):
    x = hidden_states[:, 0]
    return jnp.tanh(x @ weight.T + bias)


if __name__ == "__main__":
    B, S, H = 2, 8, 32
    key = jax.random.PRNGKey(0)
    k_h, k_w, k_b = jax.random.split(key, 3)

    hidden_states = jax.random.normal(k_h, (B, S, H), dtype=jnp.float32)
    # nn.Linear(hidden_size, hidden_size) default init: U(-1/sqrt(H), 1/sqrt(H))
    bound = 1.0 / (H ** 0.5)
    weight = jax.random.uniform(k_w, (H, H), minval=-bound, maxval=bound,
                                dtype=jnp.float32)
    bias = jax.random.uniform(k_b, (H,), minval=-bound, maxval=bound,
                              dtype=jnp.float32)

    out = pooler_forward(hidden_states, weight, bias)
    out = jax.block_until_ready(out)

    ref = pooler_reference(hidden_states, weight, bias)
    assert out.shape == (B, H)
    assert jnp.allclose(out, ref, atol=1e-5, rtol=1e-5), "mismatch vs reference"

    print("KERNEL_OK")
</pallas_src>

<mosaic_0001>
module attributes {stable_mosaic.version = 11 : i64} {
  func.func @_pooler_kernel_fullk(%arg0: i32, %arg1: i32, %arg2: memref<8x128xf32, #tpu.memory_space<vmem>>, %arg3: memref<128x128xf32, #tpu.memory_space<vmem>>, %arg4: memref<1x128xf32, #tpu.memory_space<vmem>>, %arg5: memref<8x128xf32, #tpu.memory_space<vmem>>) attributes {dimension_semantics = [#tpu.dimension_semantics<parallel>, #tpu.dimension_semantics<parallel>], iteration_bounds = array<i64: 1, 1>, scalar_prefetch = 0 : i64, scratch_operands = 0 : i64, tpu.core_type = #tpu.core_type<tc>, window_params = [{transform_indices = @transform_0, window_bounds = array<i64: 8, 128>}, {transform_indices = @transform_1, window_bounds = array<i64: 128, 128>}, {transform_indices = @transform_2, window_bounds = array<i64: 1, 128>}, {transform_indices = @transform_3, window_bounds = array<i64: 8, 128>}]} {
    %c0 = arith.constant 0 : index
    %c0_0 = arith.constant 0 : index
    %0 = vector.load %arg2[%c0, %c0_0] : memref<8x128xf32, #tpu.memory_space<vmem>>, vector<8x128xf32>
    %c0_1 = arith.constant 0 : index
    %c0_2 = arith.constant 0 : index
    %1 = vector.load %arg3[%c0_1, %c0_2] : memref<128x128xf32, #tpu.memory_space<vmem>>, vector<128x128xf32>
    %cst = arith.constant dense<0.000000e+00> : vector<8x128xf32>
    %2 = tpu.matmul %0, %1, %cst {dimension_numbers = #tpu.dot_dimension_numbers<[1], [1], [0], [0], [0, 0, 1, 0], [], []>} : vector<8x128xf32>, vector<128x128xf32>, vector<8x128xf32> -> vector<8x128xf32>
    %c0_3 = arith.constant 0 : index
    %c0_4 = arith.constant 0 : index
    %3 = vector.load %arg4[%c0_3, %c0_4] : memref<1x128xf32, #tpu.memory_space<vmem>>, vector<1x128xf32>
    %4 = vector.broadcast %3 : vector<1x128xf32> to vector<8x128xf32>
    %5 = arith.addf %2, %4 : vector<8x128xf32>
    %6 = math.tanh %5 : vector<8x128xf32>
    %c0_5 = arith.constant 0 : index
    %c0_6 = arith.constant 0 : index
    %7 = vector.load %arg5[%c0_5, %c0_6] : memref<8x128xf32, #tpu.memory_space<vmem>>, vector<8x128xf32>
    tpu.vector_store %arg5[%c0_5, %c0_6], %6 {strides = array<i32>} : memref<8x128xf32, #tpu.memory_space<vmem>>, vector<8x128xf32>,
    return
  }
  func.func @transform_0(%arg0: i32, %arg1: i32) -> (i32, i32) {
    %c0_i32 = arith.constant 0 : i32
    %c0_i32_0 = arith.constant 0 : i32
    return %arg0, %c0_i32 : i32, i32
  }
  func.func @transform_1(%arg0: i32, %arg1: i32) -> (i32, i32) {
    %c0_i32 = arith.constant 0 : i32
    %c0_i32_0 = arith.constant 0 : i32
    return %arg1, %c0_i32 : i32, i32
  }
  func.func @transform_2(%arg0: i32, %arg1: i32) -> (i32, i32) {
    %c0_i32 = arith.constant 0 : i32
    %c0_i32_0 = arith.constant 0 : i32
    return %c0_i32, %arg1 : i32, i32
  }
  func.func @transform_3(%arg0: i32, %arg1: i32) -> (i32, i32) {
    %c0_i32 = arith.constant 0 : i32
    return %arg0, %arg1 : i32, i32
  }
}

</mosaic_0001>

<llo_original>
// kernel: tpu_custom_call.1
$region0: #{tpu_custom_call.1}
  #allocation0 [shape = 'u32[]', space=smem, size = 0x4, offset = 0x4, fixed_abs, tag = 'smem constant byte address 0x4 - core index']
  #allocation1 [shape = 'u32[144,128]{1,0:T(1,128)}', space=vmem, size = 0x12000, scoped, tag = 'internal scratch']
  %s0 = inlined_call_operand.hbm [shape: f32[8,128], index: 0, kind: input, shape index: {}]
  %s1 = inlined_call_operand.hbm [shape: f32[128,128], index: 1, kind: input, shape index: {}]
  %s2 = inlined_call_operand.vmem [shape: f32[1,128], index: 2, kind: input, shape index: {}]
  %s3 = inlined_call_operand.hbm [shape: f32[8,128], index: 3, kind: output, shape index: {}]
  %s4 = sld [smem:[#allocation0]]
  $region30: #{tpu_custom_call.1} parent=0
    _
  %s6 = ssub.s32 1, %s4
  %s7 = scalar_select 0, %s6, %s4
  $region1: #{tpu_custom_call.1} parent=0
    #allocation2 [shape = 'u8[4096]{0}', space=vmem, size = 0x1000, scoped, tag = 'input window, operand 0, single buffered']
    #allocation3 [shape = 's32[1]{0}', space=sflag, size = 0x4, scoped, tag = 'scoped memory for tpu_custom_call.1']
    #allocation4 [shape = 's32[1]{0}', space=sflag, size = 0x4, scoped, tag = 'scoped memory for tpu_custom_call.1']
    #allocation5 [shape = 'u8[65536]{0}', space=vmem, size = 0x10000, scoped, tag = 'input window, operand 1, single buffered']
    #allocation6 [shape = 's32[1]{0}', space=sflag, size = 0x4, scoped, tag = 'scoped memory for tpu_custom_call.1']
    #allocation7 [shape = 'u8[4096]{0}', space=vmem, size = 0x1000, scoped, tag = 'output window, operand 0, single buffered']
    %8 = vsyncpa [#allocation3], 0
    %9 = vsyncpa [#allocation6], 0
    %10 = vsyncpa [#allocation4], 0
    // Predicated region
    $region2: #{tpu_custom_call.1} parent=1 // pred_check
      _
    $region3: #{tpu_custom_call.1} parent=1 // pred_check_branch
      %12 = sbr.rel (0) target = $region5
    $region4: #{tpu_custom_call.1} parent=1 // pred_region
      %s14 = ssub.s32 128, 128
      %15 = vsyncadd [#allocation3], %s14
      %s17 = sshll.u32 [#allocation2], 4
      %s18 = int_to_ptr.vmem [resolvable:$true] %s17
      %20 = dma.hbm_to_vmem [thread:$0]  %s0, 128, %s18, [#allocation3]
    $region5: #{tpu_custom_call.1} parent=1 // pred_fallthru
      _
    // Predicated region
    $region6: #{tpu_custom_call.1} parent=1 // pred_check
      _
    $region7: #{tpu_custom_call.1} parent=1 // pred_check_branch
      %22 = sbr.rel (0) target = $region9
    $region8: #{tpu_custom_call.1} parent=1 // pred_region
      %s24 = ssub.s32 2048, 2048
      %25 = vsyncadd [#allocation6], %s24
      %s26 = sshll.u32 [#allocation5], 4
      %s27 = int_to_ptr.vmem [resolvable:$true] %s26
      %32 = dma.hbm_to_vmem [thread:$0]  %s1, 2048, %s27, [#allocation6], 128, 128, 8
    $region9: #{tpu_custom_call.1} parent=1 // pred_fallthru
      _
    // Predicated region
    $region10: #{tpu_custom_call.1} parent=1 // pred_check
      _
    $region11: #{tpu_custom_call.1} parent=1 // pred_check_branch
      %34 = sbr.rel (0) target = $region13
    $region12: #{tpu_custom_call.1} parent=1 // pred_region
      _
    $region13: #{tpu_custom_call.1} parent=1 // pred_fallthru
      _
    // Predicated region
    $region14: #{tpu_custom_call.1} parent=1 // pred_check
      _
    $region15: #{tpu_custom_call.1} parent=1 // pred_check_branch
      %36 = sbr.rel (0) target = $region17
    $region16: #{tpu_custom_call.1} parent=1 // pred_region
      %37 = dma.done [#allocation3], 128
    $region17: #{tpu_custom_call.1} parent=1 // pred_fallthru
      _
    // Predicated region
    $region18: #{tpu_custom_call.1} parent=1 // pred_check
      _
    $region19: #{tpu_custom_call.1} parent=1 // pred_check_branch
      %39 = sbr.rel (0) target = $region21
    $region20: #{tpu_custom_call.1} parent=1 // pred_region
      %40 = dma.done [#allocation6], 2048
    $region21: #{tpu_custom_call.1} parent=1 // pred_fallthru
      _
    %v41 = vld [vmem:[#allocation2] sm:$0xff]
    %v42 = vld [vmem:[#allocation5] sm:$0xff]
    %v43 = vld [vmem:[#allocation5 + $0x8] sm:$0xff]
    %v44 = vld [vmem:[#allocation5 + $0x10] sm:$0xff]
    %v45 = vld [vmem:[#allocation5 + $0x18] sm:$0xff]
    %v46 = vld [vmem:[#allocation5 + $0x20] sm:$0xff]
    %v47 = vld [vmem:[#allocation5 + $0x28] sm:$0xff]
    %v48 = vld [vmem:[#allocation5 + $0x30] sm:$0xff]
    %v49 = vld [vmem:[#allocation5 + $0x38] sm:$0xff]
    %v50 = vld [vmem:[#allocation5 + $0x40] sm:$0xff]
    %v51 = vld [vmem:[#allocation5 + $0x48] sm:$0xff]
    %v52 = vld [vmem:[#allocation5 + $0x50] sm:$0xff]
    %v53 = vld [vmem:[#allocation5 + $0x58] sm:$0xff]
    %v54 = vld [vmem:[#allocation5 + $0x60] sm:$0xff]
    %v55 = vld [vmem:[#allocation5 + $0x68] sm:$0xff]
    %v56 = vld [vmem:[#allocation5 + $0x70] sm:$0xff]
    %v57 = vld [vmem:[#allocation5 + $0x78] sm:$0xff]
    %v58 = vld [vmem:[%s2] sm:$0x1]
    %v60 = vlaneseq
    %v61 = vshrl.u32 %v60, 7
    %v62 = vsub.s32 0, %v61
    %v63 = vrot.slane %v58, %v62
    %65 = vmatprep.subr.mxu0 0.0
    %66 = vmatpush1.xpose.msra.mxu0 %v57
    %67 = vmatprep.subr.mxu0 0.0
    %68 = vmatpush1.xpose.msra.mxu0 %v56
    %69 = vmatprep.subr.mxu0 0.0
    %70 = vmatpush1.xpose.msra.mxu0 %v55
    %71 = vmatprep.subr.mxu0 0.0
    %72 = vmatpush1.xpose.msra.mxu0 %v54
    %73 = vmatprep.subr.mxu0 0.0
    %74 = vmatpush1.xpose.msra.mxu0 %v53
    %75 = vmatprep.subr.mxu0 0.0
    %76 = vmatpush1.xpose.msra.mxu0 %v52
    %77 = vmatprep.subr.mxu0 0.0
    %78 = vmatpush1.xpose.msra.mxu0 %v51
    %79 = vmatprep.subr.mxu0 0.0
    %80 = vmatpush1.xpose.msra.mxu0 %v50
    %81 = vmatprep.subr.mxu0 0.0
    %82 = vmatpush1.xpose.msra.mxu0 %v49
    %83 = vmatprep.subr.mxu0 0.0
    %84 = vmatpush1.xpose.msra.mxu0 %v48
    %85 = vmatprep.subr.mxu0 0.0
    %86 = vmatpush1.xpose.msra.mxu0 %v47
    %87 = vmatprep.subr.mxu0 0.0
    %88 = vmatpush1.xpose.msra.mxu0 %v46
    %89 = vmatprep.subr.mxu0 0.0
    %90 = vmatpush1.xpose.msra.mxu0 %v45
    %91 = vmatprep.subr.mxu0 0.0
    %92 = vmatpush1.xpose.msra.mxu0 %v44
    %93 = vmatprep.subr.mxu0 0.0
    %94 = vmatpush1.xpose.msra.mxu0 %v43
    %95 = vmatprep.subr.mxu0 0.0
    %96 = vmatpush1.xpose.msra.mxu0 %v42
    %97 = vmatprep.subr.mxu0 0.0
    %98 = vmatpush2.xpose.msra.mxu0 0.0
    %99 = vmatprep.subr.mxu0 0.0
    %100 = vmatpush2.xpose.msra.mxu0 0.0
    %101 = vmatprep.subr.mxu0 0.0
    %102 = vmatpush2.xpose.msra.mxu0 0.0
    %103 = vmatprep.subr.mxu0 0.0
    %104 = vmatpush2.xpose.msra.mxu0 0.0
    %105 = vmatprep.subr.mxu0 0.0
    %106 = vmatpush2.xpose.msra.mxu0 0.0
    %107 = vmatprep.subr.mxu0 0.0
    %108 = vmatpush2.xpose.msra.mxu0 0.0
    %109 = vmatprep.subr.mxu0 0.0
    %110 = vmatpush2.xpose.msra.mxu0 0.0
    %111 = vmatprep.subr.mxu0 0.0
    %112 = vmatpush2.xpose.msra.mxu0 0.0
    %113 = vmatprep.subr.mxu0 0.0
    %114 = vmatpush2.xpose.msra.mxu0 0.0
    %115 = vmatprep.subr.mxu0 0.0
    %116 = vmatpush2.xpose.msra.mxu0 0.0
    %117 = vmatprep.subr.mxu0 0.0
    %118 = vmatpush2.xpose.msra.mxu0 0.0
    %119 = vmatprep.subr.mxu0 0.0
    %120 = vmatpush2.xpose.msra.mxu0 0.0
    %121 = vmatprep.subr.mxu0 0.0
    %122 = vmatpush2.xpose.msra.mxu0 0.0
    %123 = vmatprep.subr.mxu0 0.0
    %124 = vmatpush2.xpose.msra.mxu0 0.0
    %125 = vmatprep.subr.mxu0 0.0
    %126 = vmatpush2.xpose.msra.mxu0 0.0
    %127 = vmatprep.subr.mxu0 0.0
    %128 = vmatpush2.xpose.msra.mxu0 0.0
    %129 = vmatprep.mubr.f32.mxu0 0.0
    %130 = vmatmul.mubr.f32.gmra.mxu0 %v41
    %v131 = vpop.f32.mrf.mxu0
    %v132 = vadd.f32 %v63, %v131
    %v133 = vpop.f32.mrf.mxu0
    %134 = vdwg.mxu0
    %v135 = vtanh.pop %v132
    %136 = vst [vmem:[#allocation7] sm:$0xff] %v135
    // Predicated region
    $region22: #{tpu_custom_call.1} parent=1 // pred_check
      _
    $region23: #{tpu_custom_call.1} parent=1 // pred_check_branch
      %138 = sbr.rel (0) target = $region25
    $region24: #{tpu_custom_call.1} parent=1 // pred_region
      %s140 = ssub.s32 128, 128
      %141 = vsyncadd [#allocation4], %s140
      %s143 = sshll.u32 [#allocation7], 4
      %s144 = int_to_ptr.vmem [resolvable:$true] %s143
      %146 = dma.vmem_to_hbm [thread:$0]  %s144, 128, %s3, [#allocation4]
    $region25: #{tpu_custom_call.1} parent=1 // pred_fallthru
      _
    // Predicated region
    $region26: #{tpu_custom_call.1} parent=1 // pred_check
      _
    $region27: #{tpu_custom_call.1} parent=1 // pred_check_branch
      %148 = sbr.rel (0) target = $region29
    $region28: #{tpu_custom_call.1} parent=1 // pred_region
      %149 = dma.done [#allocation4], 128
    $region29: #{tpu_custom_call.1} parent=1 // pred_fallthru
      _
    %150 = vsyncpa [#allocation3], 1
    %151 = vsyncpa [#allocation6], 1
    %152 = vsyncpa [#allocation4], 1

</llo_original>
